<compile_context>
chip_gen: v5e
topology: v5e:2x2
jax: 0.10.0
libtpu: 0.0.40
codegen_flags: <defaults>
</compile_context>

<pallas_src>
import jax
import jax.numpy as jnp
from jax import lax
from jax.experimental import pallas as pl
from jax.experimental.pallas import tpu as pltpu


def _round_up(x, m):
    return ((x + m - 1) // m) * m


def _make_kernel(feature_major):
    """Kernel for one batch tile.

    batch-major   : y_ref (bm, Fe), n_ref (bm, Fs)
    feature-major : y_ref (Fe, bm), n_ref (Fs, bm)
    wy_ref (1, Fe), wn_ref (1, Fs)  -- folded weights (VMEM, resident)
    b_ref  (1,)                     -- combined bias (SMEM)
    o_ref  (1, bm)                  -- lane-dense output row for this tile
    """
    # Fold-weight row (1, F) against the tile, result (1, bm):
    #   batch-major tile   (bm, F): contract weight dim 1 with tile dim 1
    #   feature-major tile (F, bm): contract weight dim 1 with tile dim 0
    dims = (((1,), (0,)), ((), ())) if feature_major else (((1,), (1,)), ((), ()))

    def kernel(y_ref, n_ref, wy_ref, wn_ref, b_ref, o_ref):
        yv = lax.dot_general(wy_ref[...], y_ref[...], dimension_numbers=dims,
                             preferred_element_type=jnp.float32)
        nv = lax.dot_general(wn_ref[...], n_ref[...], dimension_numbers=dims,
                             preferred_element_type=jnp.float32)
        o_ref[...] = (yv + nv + b_ref[0]).astype(o_ref.dtype)

    return kernel


def ep_allmer_linear(Y_ji, N_ji, params, *, feature_major=False, bm=None,
                     buffer_count=2):
    """Fused forward pass; returns shape (B,) like the PyTorch module.

    feature_major=False : Y_ji (B, Fe), N_ji (B, Fs)  (module's native layout)
    feature_major=True  : Y_ji (Fe, B), N_ji (Fs, B)  (preferred when free
                          upstream: batch on lanes -> no 128-lane feature pad)
    """
    if feature_major:
        Fe, B = Y_ji.shape
        Fs, B2 = N_ji.shape
    else:
        B, Fe = Y_ji.shape
        B2, Fs = N_ji.shape
    assert B == B2, "batch mismatch between Y_ji and N_ji"

    # ---- fold final_linear into the feature linears (exact algebra, in f32) ----
    wf = params["wf"].reshape(2).astype(jnp.float32)
    wy = (wf[0] * params["wy"].reshape(1, Fe).astype(jnp.float32)).astype(Y_ji.dtype)
    wn = (wf[1] * params["wn"].reshape(1, Fs).astype(jnp.float32)).astype(N_ji.dtype)
    bias = (wf[0] * params["by"].reshape(()).astype(jnp.float32)
            + wf[1] * params["bn"].reshape(()).astype(jnp.float32)
            + params["bf"].reshape(()).astype(jnp.float32)).reshape(1)

    # ---- per-generation VMEM budget -> batch tile size ----
    itemsize = jnp.dtype(Y_ji.dtype).itemsize
    if feature_major:
        # batch sits on lanes; features only pad to the 8-sublane granule
        row_bytes = (_round_up(Fe, 8) + _round_up(Fs, 8)) * itemsize
    else:
        # narrow feature dims pad to 128 lanes in the tiled VMEM/HBM layout
        row_bytes = (_round_up(Fe, 128) + _round_up(Fs, 128)) * itemsize

    try:  # 128 MiB on v5e/v6e, 64 MiB on v7x -> budget auto-halves on v7x
        vmem_cap = int(getattr(pltpu.get_tpu_info(), "vmem_capacity_bytes",
                               128 << 20))
    except Exception:
        vmem_cap = 128 << 20
    budget = vmem_cap // 4  # conservative scoped budget for the input buffers

    # keep >=2 grid steps whenever the batch allows it (v7x has 2 TensorCores)
    min_tiles = 2 if B > 128 else 1
    bm_batch_cap = _round_up(pl.cdiv(B, min_tiles), 128)
    if bm is None:
        bm = (budget // (buffer_count * row_bytes)) // 128 * 128
    else:
        bm = _round_up(bm, 128)
    bm = max(128, min(bm, bm_batch_cap))
    num_tiles = pl.cdiv(B, bm)

    # Degenerate single-tile case (bm > B): pad <=127 rows so the block never
    # exceeds the array.  Multi-tile partial last blocks use normal Pallas
    # edge handling (their garbage tail lanes are discarded by out[0, :B]).
    if num_tiles == 1 and bm > B:
        pad = ((0, 0), (0, bm - B)) if feature_major else ((0, bm - B), (0, 0))
        Y_ji = jnp.pad(Y_ji, pad)
        N_ji = jnp.pad(N_ji, pad)

    # ---- block specs ----
    def _spec(shape, imap):
        if buffer_count == 2:
            return pl.BlockSpec(shape, imap)
        return pl.BlockSpec(shape, imap, pipeline_mode=pl.Buffered(buffer_count))

    if feature_major:
        y_spec = _spec((Fe, bm), lambda i: (0, i))
        n_spec = _spec((Fs, bm), lambda i: (0, i))
    else:
        y_spec = _spec((bm, Fe), lambda i: (i, 0))
        n_spec = _spec((bm, Fs), lambda i: (i, 0))

    # VMEM actually needed (input buffers + double-buffered (1,bm) out + weights)
    need = (buffer_count * bm * row_bytes
            + 2 * bm * itemsize
            + 2 * (_round_up(Fe, 128) + _round_up(Fs, 128)) * itemsize)
    vmem_limit = int(min(vmem_cap, max(2 * need + (4 << 20), 16 << 20)))

    cost = pl.CostEstimate(
        flops=2 * B * (Fe + Fs),
        transcendentals=0,
        # padded-layout HBM traffic estimate (scheduling hint only)
        bytes_accessed=int(B * row_bytes + B * itemsize
                           + (_round_up(Fe, 128) + _round_up(Fs, 128)) * itemsize),
    )

    out = pl.pallas_call(
        _make_kernel(feature_major),
        out_shape=jax.ShapeDtypeStruct((1, num_tiles * bm), Y_ji.dtype),
        grid_spec=pltpu.PrefetchScalarGridSpec(
            num_scalar_prefetch=0,
            grid=(num_tiles,),
            in_specs=[
                y_spec,                                              # Y tile
                n_spec,                                              # N tile
                pl.BlockSpec((1, Fe), lambda i: (0, 0)),             # folded wy
                pl.BlockSpec((1, Fs), lambda i: (0, 0)),             # folded wn
                pl.BlockSpec(memory_space=pltpu.MemorySpace.SMEM),   # bias
            ],
            out_specs=pl.BlockSpec((1, bm), lambda i: (0, i)),       # lane-dense
        ),
        compiler_params=pltpu.CompilerParams(
            dimension_semantics=("parallel",),
            vmem_limit_bytes=vmem_limit),
        cost_estimate=cost,
    )(Y_ji, N_ji, wy, wn, bias)

    # drop padded tail, squeeze(-1) equivalent
    return out[0, :B]


def init_params(key, num_ep_features, num_seq_features, dtype=jnp.float32):
    """Deterministic init mimicking nn.Linear's U(-1/sqrt(fan_in), 1/sqrt(fan_in))."""
    ks = jax.random.split(key, 6)

    def uni(k, shape, fan_in):
        bound = 1.0 / jnp.sqrt(jnp.asarray(fan_in, dtype))
        return jax.random.uniform(k, shape, dtype, -bound, bound)

    return {
        "wy": uni(ks[0], (1, num_ep_features), num_ep_features),
        "by": uni(ks[1], (1,), num_ep_features),
        "wn": uni(ks[2], (1, num_seq_features), num_seq_features),
        "bn": uni(ks[3], (1,), num_seq_features),
        "wf": uni(ks[4], (1, 2), 2),
        "bf": uni(ks[5], (1,), 2),
    }


def _reference(Y, N, p):
    y = Y @ p["wy"].reshape(-1, 1) + p["by"]
    n = N @ p["wn"].reshape(-1, 1) + p["bn"]
    x = jnp.concatenate([y, n], axis=-1) @ p["wf"].reshape(-1, 1) + p["bf"]
    return x[..., 0]


if __name__ == "__main__":
    num_ep_features = 32
    num_seq_features = 16
    batch = 8

    key = jax.random.PRNGKey(0)
    k_p, k_y, k_n = jax.random.split(key, 3)

    params = init_params(k_p, num_ep_features, num_seq_features)
    Y_ji = jax.random.normal(k_y, (batch, num_ep_features), jnp.float32)
    N_ji = jax.random.normal(k_n, (batch, num_seq_features), jnp.float32)

    # 1) module-native (batch-major) layout, tiny batch (single padded tile)
    out = jax.block_until_ready(ep_allmer_linear(Y_ji, N_ji, params))
    ref = _reference(Y_ji, N_ji, params)
    assert out.shape == (batch,)
    assert jnp.allclose(out, ref, atol=1e-5, rtol=1e-5), (out, ref)

    # 2) multi-tile + partial-last-tile path (batch-major, explicit bm)
    B2 = 300
    Y2 = jax.random.normal(jax.random.PRNGKey(1), (B2, num_ep_features), jnp.float32)
    N2 = jax.random.normal(jax.random.PRNGKey(2), (B2, num_seq_features), jnp.float32)
    ref2 = _reference(Y2, N2, params)
    out2 = jax.block_until_ready(ep_allmer_linear(Y2, N2, params, bm=128))
    assert out2.shape == (B2,)
    assert jnp.allclose(out2, ref2, atol=1e-5, rtol=1e-5)

    # 3) feature-major fast path (preferred upstream layout: batch on lanes)
    out3 = jax.block_until_ready(
        ep_allmer_linear(Y2.T, N2.T, params, feature_major=True))
    assert out3.shape == (B2,)
    assert jnp.allclose(out3, ref2, atol=1e-5, rtol=1e-5)

    print("KERNEL_OK")
</pallas_src>

<mosaic_0001>
module attributes {stable_mosaic.version = 11 : i64} {
  func.func @kernel(%arg0: i32, %arg1: memref<128x32xf32, #tpu.memory_space<vmem>>, %arg2: memref<128x16xf32, #tpu.memory_space<vmem>>, %arg3: memref<1x32xf32, #tpu.memory_space<vmem>>, %arg4: memref<1x16xf32, #tpu.memory_space<vmem>>, %arg5: memref<1xf32, #tpu.memory_space<smem>>, %arg6: memref<1x128xf32, #tpu.memory_space<vmem>>) attributes {dimension_semantics = [#tpu.dimension_semantics<parallel>], iteration_bounds = array<i64: 1>, scalar_prefetch = 0 : i64, scratch_operands = 0 : i64, tpu.core_type = #tpu.core_type<tc>, window_params = [{transform_indices = @transform_0, window_bounds = array<i64: 128, 32>}, {transform_indices = @transform_1, window_bounds = array<i64: 128, 16>}, {pipeline_mode = #tpu.pipeline_mode<synchronous>, transform_indices = @transform_2, window_bounds = array<i64: 1, 32>}, {pipeline_mode = #tpu.pipeline_mode<synchronous>, transform_indices = @transform_3, window_bounds = array<i64: 1, 16>}, {transform_indices = @transform_4, window_bounds = array<i64: 1>}, {transform_indices = @transform_5, window_bounds = array<i64: 1, 128>}]} {
    %c0 = arith.constant 0 : index
    %c0_0 = arith.constant 0 : index
    %0 = vector.load %arg3[%c0, %c0_0] : memref<1x32xf32, #tpu.memory_space<vmem>>, vector<1x32xf32>
    %c0_1 = arith.constant 0 : index
    %c0_2 = arith.constant 0 : index
    %1 = vector.load %arg1[%c0_1, %c0_2] : memref<128x32xf32, #tpu.memory_space<vmem>>, vector<128x32xf32>
    %cst = arith.constant dense<0.000000e+00> : vector<1x128xf32>
    %2 = tpu.matmul %0, %1, %cst {dimension_numbers = #tpu.dot_dimension_numbers<[1], [1], [0], [0], [0, 0, 1, 0], [], []>} : vector<1x32xf32>, vector<128x32xf32>, vector<1x128xf32> -> vector<1x128xf32>
    %c0_3 = arith.constant 0 : index
    %c0_4 = arith.constant 0 : index
    %3 = vector.load %arg4[%c0_3, %c0_4] : memref<1x16xf32, #tpu.memory_space<vmem>>, vector<1x16xf32>
    %c0_5 = arith.constant 0 : index
    %c0_6 = arith.constant 0 : index
    %4 = vector.load %arg2[%c0_5, %c0_6] : memref<128x16xf32, #tpu.memory_space<vmem>>, vector<128x16xf32>
    %cst_7 = arith.constant dense<0.000000e+00> : vector<1x128xf32>
    %5 = tpu.matmul %3, %4, %cst_7 {dimension_numbers = #tpu.dot_dimension_numbers<[1], [1], [0], [0], [0, 0, 1, 0], [], []>} : vector<1x16xf32>, vector<128x16xf32>, vector<1x128xf32> -> vector<1x128xf32>
    %6 = arith.addf %2, %5 : vector<1x128xf32>
    %c0_8 = arith.constant 0 : index
    %7 = memref.load %arg5[%c0_8] : memref<1xf32, #tpu.memory_space<smem>>
    %8 = vector.broadcast %7 : f32 to vector<1x128xf32>
    %9 = arith.addf %6, %8 : vector<1x128xf32>
    %c0_9 = arith.constant 0 : index
    %c0_10 = arith.constant 0 : index
    %10 = vector.load %arg6[%c0_9, %c0_10] : memref<1x128xf32, #tpu.memory_space<vmem>>, vector<1x128xf32>
    tpu.vector_store %arg6[%c0_9, %c0_10], %9 {strides = array<i32>} : memref<1x128xf32, #tpu.memory_space<vmem>>, vector<1x128xf32>,
    return
  }
  func.func @transform_0(%arg0: i32) -> (i32, i32) {
    %c0_i32 = arith.constant 0 : i32
    %c0_i32_0 = arith.constant 0 : i32
    return %arg0, %c0_i32 : i32, i32
  }
  func.func @transform_1(%arg0: i32) -> (i32, i32) {
    %c0_i32 = arith.constant 0 : i32
    %c0_i32_0 = arith.constant 0 : i32
    return %arg0, %c0_i32 : i32, i32
  }
  func.func @transform_2(%arg0: i32) -> (i32, i32) {
    %c0_i32 = arith.constant 0 : i32
    %c0_i32_0 = arith.constant 0 : i32
    %c0_i32_1 = arith.constant 0 : i32
    return %c0_i32, %c0_i32_0 : i32, i32
  }
  func.func @transform_3(%arg0: i32) -> (i32, i32) {
    %c0_i32 = arith.constant 0 : i32
    %c0_i32_0 = arith.constant 0 : i32
    %c0_i32_1 = arith.constant 0 : i32
    return %c0_i32, %c0_i32_0 : i32, i32
  }
  func.func @transform_4(%arg0: i32) -> i32 {
    %c0_i32 = arith.constant 0 : i32
    %c0_i32_0 = arith.constant 0 : i32
    return %c0_i32 : i32
  }
  func.func @transform_5(%arg0: i32) -> (i32, i32) {
    %c0_i32 = arith.constant 0 : i32
    %c0_i32_0 = arith.constant 0 : i32
    return %c0_i32, %arg0 : i32, i32
  }
}

</mosaic_0001>

<llo_original>
// kernel: tpu_custom_call.1
$region0: #{tpu_custom_call.1}
  #allocation0 [shape = 'u32[]', space=smem, size = 0x4, offset = 0x4, fixed_abs, tag = 'smem constant byte address 0x4 - core index']
  #allocation1 [shape = 'u32[72,128]{1,0:T(1,128)}', space=vmem, size = 0x9000, scoped, tag = 'internal scratch']
  #allocation2 [shape = 'f32[1]{0:T(128)S(6)}', space=smem, size = 0x200, scoped, tag = 'scoped memory for tpu_custom_call.1']
  %s0 = inlined_call_operand.vmem [shape: f32[128,32], index: 0, kind: input, shape index: {}]
  %s1 = inlined_call_operand.vmem [shape: f32[128,16], index: 1, kind: input, shape index: {}]
  %s2 = inlined_call_operand.vmem [shape: f32[1,32], index: 2, kind: input, shape index: {}]
  %s3 = inlined_call_operand.vmem [shape: f32[1,16], index: 3, kind: input, shape index: {}]
  %s4 = inlined_call_operand.<no memory space> [shape: f32[1], index: 4, kind: input, shape index: {}]
  %s5 = inlined_call_operand.hbm [shape: f32[1,128], index: 5, kind: output, shape index: {}]
  %s6 = sld [smem:[#allocation0]]
  $region30: #{tpu_custom_call.1} parent=0
    _
  %s8 = ssub.s32 1, %s6
  %s9 = scalar_select 0, %s8, %s6
  %10 = sst [smem:[#allocation2]] %s4
  $region1: #{tpu_custom_call.1} parent=0
    #allocation3 [shape = 'u8[512]{0}', space=vmem, size = 0x400, scoped, tag = 'output window, operand 0, single buffered']
    #allocation4 [shape = 's32[1]{0}', space=sflag, size = 0x4, scoped, tag = 'scoped memory for tpu_custom_call.1']
    %11 = vsyncpa [#allocation4], 0
    // Predicated region
    $region2: #{tpu_custom_call.1} parent=1 // pred_check
      _
    $region3: #{tpu_custom_call.1} parent=1 // pred_check_branch
      %13 = sbr.rel (0) target = $region5
    $region4: #{tpu_custom_call.1} parent=1 // pred_region
      _
    $region5: #{tpu_custom_call.1} parent=1 // pred_fallthru
      _
    // Predicated region
    $region6: #{tpu_custom_call.1} parent=1 // pred_check
      _
    $region7: #{tpu_custom_call.1} parent=1 // pred_check_branch
      %15 = sbr.rel (0) target = $region9
    $region8: #{tpu_custom_call.1} parent=1 // pred_region
      _
    $region9: #{tpu_custom_call.1} parent=1 // pred_fallthru
      _
    // Predicated region
    $region10: #{tpu_custom_call.1} parent=1 // pred_check
      _
    $region11: #{tpu_custom_call.1} parent=1 // pred_check_branch
      %17 = sbr.rel (0) target = $region13
    $region12: #{tpu_custom_call.1} parent=1 // pred_region
      _
    $region13: #{tpu_custom_call.1} parent=1 // pred_fallthru
      _
    // Predicated region
    $region14: #{tpu_custom_call.1} parent=1 // pred_check
      _
    $region15: #{tpu_custom_call.1} parent=1 // pred_check_branch
      %19 = sbr.rel (0) target = $region17
    $region16: #{tpu_custom_call.1} parent=1 // pred_region
      _
    $region17: #{tpu_custom_call.1} parent=1 // pred_fallthru
      _
    // Predicated region
    $region18: #{tpu_custom_call.1} parent=1 // pred_check
      _
    $region19: #{tpu_custom_call.1} parent=1 // pred_check_branch
      %21 = sbr.rel (0) target = $region21
    $region20: #{tpu_custom_call.1} parent=1 // pred_region
      _
    $region21: #{tpu_custom_call.1} parent=1 // pred_fallthru
      _
    %v22 = vld [vmem:[%s2] sm:$0x1]
    %v23 = vld [vmem:[%s0] sm:$0xff]
    %v24 = vld [vmem:[%s0 + $0x8] sm:$0xff]
    %v25 = vld [vmem:[%s0 + $0x10] sm:$0xff]
    %v26 = vld [vmem:[%s0 + $0x18] sm:$0xff]
    %v27 = vld [vmem:[%s0 + $0x20] sm:$0xff]
    %v28 = vld [vmem:[%s0 + $0x28] sm:$0xff]
    %v29 = vld [vmem:[%s0 + $0x30] sm:$0xff]
    %v30 = vld [vmem:[%s0 + $0x38] sm:$0xff]
    %v31 = vld [vmem:[%s0 + $0x40] sm:$0xff]
    %v32 = vld [vmem:[%s0 + $0x48] sm:$0xff]
    %v33 = vld [vmem:[%s0 + $0x50] sm:$0xff]
    %v34 = vld [vmem:[%s0 + $0x58] sm:$0xff]
    %v35 = vld [vmem:[%s0 + $0x60] sm:$0xff]
    %v36 = vld [vmem:[%s0 + $0x68] sm:$0xff]
    %v37 = vld [vmem:[%s0 + $0x70] sm:$0xff]
    %v38 = vld [vmem:[%s0 + $0x78] sm:$0xff]
    %v39 = vld [vmem:[%s3] sm:$0x1]
    %v40 = vld [vmem:[%s1] sm:$0xff]
    %v41 = vld [vmem:[%s1 + $0x8] sm:$0xff]
    %v42 = vld [vmem:[%s1 + $0x10] sm:$0xff]
    %v43 = vld [vmem:[%s1 + $0x18] sm:$0xff]
    %v44 = vld [vmem:[%s1 + $0x20] sm:$0xff]
    %v45 = vld [vmem:[%s1 + $0x28] sm:$0xff]
    %v46 = vld [vmem:[%s1 + $0x30] sm:$0xff]
    %v47 = vld [vmem:[%s1 + $0x38] sm:$0xff]
    %v48 = vld [vmem:[%s1 + $0x40] sm:$0xff]
    %v49 = vld [vmem:[%s1 + $0x48] sm:$0xff]
    %v50 = vld [vmem:[%s1 + $0x50] sm:$0xff]
    %v51 = vld [vmem:[%s1 + $0x58] sm:$0xff]
    %v52 = vld [vmem:[%s1 + $0x60] sm:$0xff]
    %v53 = vld [vmem:[%s1 + $0x68] sm:$0xff]
    %v54 = vld [vmem:[%s1 + $0x70] sm:$0xff]
    %v55 = vld [vmem:[%s1 + $0x78] sm:$0xff]
    %vm56 = vcmask 130048
    %v58 = vsel %vm56, %v39, 0
    %v61 = vsel %vm56, %v40, 0
    %v64 = vsel %vm56, %v41, 0
    %v67 = vsel %vm56, %v42, 0
    %v70 = vsel %vm56, %v43, 0
    %v73 = vsel %vm56, %v44, 0
    %v76 = vsel %vm56, %v45, 0
    %v79 = vsel %vm56, %v46, 0
    %v82 = vsel %vm56, %v47, 0
    %v85 = vsel %vm56, %v48, 0
    %v88 = vsel %vm56, %v49, 0
    %v91 = vsel %vm56, %v50, 0
    %v94 = vsel %vm56, %v51, 0
    %v97 = vsel %vm56, %v52, 0
    %v100 = vsel %vm56, %v53, 0
    %v103 = vsel %vm56, %v54, 0
    %v106 = vsel %vm56, %v55, 0
    %108 = vmatpush.xpose.msra.mxu0 %v106
    %109 = vmatpush.xpose.msra.mxu0 %v103
    %110 = vmatpush.xpose.msra.mxu0 %v100
    %111 = vmatpush.xpose.msra.mxu0 %v97
    %112 = vmatpush.xpose.msra.mxu0 %v94
    %113 = vmatpush.xpose.msra.mxu0 %v91
    %114 = vmatpush.xpose.msra.mxu0 %v88
    %115 = vmatpush.xpose.msra.mxu0 %v85
    %116 = vmatpush.xpose.msra.mxu0 %v82
    %117 = vmatpush.xpose.msra.mxu0 %v79
    %118 = vmatpush.xpose.msra.mxu0 %v76
    %119 = vmatpush.xpose.msra.mxu0 %v73
    %120 = vmatpush.xpose.msra.mxu0 %v70
    %121 = vmatpush.xpose.msra.mxu0 %v67
    %122 = vmatpush.xpose.msra.mxu0 %v64
    %123 = vmatpush.xpose.msra.mxu0 %v61
    %124 = vmatmul.f32.gmra.mxu0 %v58
    %v125 = vpop.f32.mrf.mxu0
    %v126 = vadd.f32 0.0, %v125
    %127 = vdwg.mxu0
    %vm128 = vcmask 261120
    %v130 = vsel %vm128, %v22, 0
    %v133 = vsel %vm128, %v23, 0
    %v136 = vsel %vm128, %v24, 0
    %v139 = vsel %vm128, %v25, 0
    %v142 = vsel %vm128, %v26, 0
    %v145 = vsel %vm128, %v27, 0
    %v148 = vsel %vm128, %v28, 0
    %v151 = vsel %vm128, %v29, 0
    %v154 = vsel %vm128, %v30, 0
    %v157 = vsel %vm128, %v31, 0
    %v160 = vsel %vm128, %v32, 0
    %v163 = vsel %vm128, %v33, 0
    %v166 = vsel %vm128, %v34, 0
    %v169 = vsel %vm128, %v35, 0
    %v172 = vsel %vm128, %v36, 0
    %v175 = vsel %vm128, %v37, 0
    %v178 = vsel %vm128, %v38, 0
    %180 = vmatpush.xpose.msra.mxu0 %v178
    %181 = vmatpush.xpose.msra.mxu0 %v175
    %182 = vmatpush.xpose.msra.mxu0 %v172
    %183 = vmatpush.xpose.msra.mxu0 %v169
    %184 = vmatpush.xpose.msra.mxu0 %v166
    %185 = vmatpush.xpose.msra.mxu0 %v163
    %186 = vmatpush.xpose.msra.mxu0 %v160
    %187 = vmatpush.xpose.msra.mxu0 %v157
    %188 = vmatpush.xpose.msra.mxu0 %v154
    %189 = vmatpush.xpose.msra.mxu0 %v151
    %190 = vmatpush.xpose.msra.mxu0 %v148
    %191 = vmatpush.xpose.msra.mxu0 %v145
    %192 = vmatpush.xpose.msra.mxu0 %v142
    %193 = vmatpush.xpose.msra.mxu0 %v139
    %194 = vmatpush.xpose.msra.mxu0 %v136
    %195 = vmatpush.xpose.msra.mxu0 %v133
    %196 = vmatmul.f32.gmra.mxu0 %v130
    %v197 = vpop.f32.mrf.mxu0
    %v198 = vadd.f32 %v126, %v197
    %199 = vdwg.mxu0
    %s200 = sld [smem:[#allocation2]]
    %v201 = vstv %s200
    %v202 = vadd.f32 %v198, %v201
    %203 = vst [vmem:[#allocation3] sm:$0x1] %v202
    // Predicated region
    $region22: #{tpu_custom_call.1} parent=1 // pred_check
      _
    $region23: #{tpu_custom_call.1} parent=1 // pred_check_branch
      %205 = sbr.rel (0) target = $region25
    $region24: #{tpu_custom_call.1} parent=1 // pred_region
      %207 = vsyncadd [#allocation4], 0
      %s209 = sshll.u32 [#allocation3], 4
      %s210 = int_to_ptr.vmem [resolvable:$true] %s209
      %s211 = sshll.u32 %s5, 4
      %s212 = int_to_ptr.hbm [resolvable:$true] %s211
      %214 = dma.vmem_to_hbm [thread:$0]  %s210, 16, %s212, [#allocation4]
    $region25: #{tpu_custom_call.1} parent=1 // pred_fallthru
      _
    // Predicated region
    $region26: #{tpu_custom_call.1} parent=1 // pred_check
      _
    $region27: #{tpu_custom_call.1} parent=1 // pred_check_branch
      %216 = sbr.rel (0) target = $region29
    $region28: #{tpu_custom_call.1} parent=1 // pred_region
      %218 = dma.done [#allocation4], 16
    $region29: #{tpu_custom_call.1} parent=1 // pred_fallthru
      _
    %219 = vsyncpa [#allocation4], 1

</llo_original>
